<compile_context>
chip_gen: v7x
topology: tpu7x:2x2x1
jax: 0.10.0
libtpu: 0.0.40
codegen_flags: <defaults>
</compile_context>

<pallas_src>
import jax
import jax.numpy as jnp
from jax.experimental import pallas as pl
from jax.experimental.pallas import tpu as pltpu


# --------------------- kernel 1: fused Q/K/V projection ----------------------
def _qkv_proj_kernel(x_ref, wqkv_ref, q_ref, k_ref, v_ref):
    """Project one (batch, token-tile) slab into per-head bf16 Q/K/V."""
    _, tt, E = x_ref.shape
    H = q_ref.shape[1]
    HE = H * E

    x = x_ref[0]                                                        # (tt, E) bf16
    qkv = jnp.dot(x, wqkv_ref[...], preferred_element_type=jnp.float32)  # (tt, 3*H*E)
    qkv = qkv.astype(jnp.bfloat16)   # cast BEFORE relayout: halves XLU/VMEM bytes

    if E % 128 == 0:
        # Lane-aligned per-head static slices: no cross-sublane transpose needed.
        for h in range(H):
            q_ref[0, h] = qkv[:, h * E:(h + 1) * E]
            k_ref[0, h] = qkv[:, HE + h * E:HE + (h + 1) * E]
            v_ref[0, h] = qkv[:, 2 * HE + h * E:2 * HE + (h + 1) * E]
    else:
        q_ref[0] = jnp.transpose(qkv[:, :HE].reshape(tt, H, E), (1, 0, 2))
        k_ref[0] = jnp.transpose(qkv[:, HE:2 * HE].reshape(tt, H, E), (1, 0, 2))
        v_ref[0] = jnp.transpose(qkv[:, 2 * HE:].reshape(tt, H, E), (1, 0, 2))


# -------------- kernel 2: flash attention + fused unifyheads -----------------
def _flash_unify_kernel(q_ref, k_ref, v_ref, wu_ref, bu_ref, o_ref,
                        m_scr, l_scr, acc_scr):
    """One (batch, q-tile, k-tile) grid step; online softmax over the key axis."""
    H, tq, E = acc_scr.shape
    ki = pl.program_id(2)

    @pl.when(ki == 0)
    def _init():
        m_scr[...] = jnp.full_like(m_scr, -jnp.inf)
        l_scr[...] = jnp.zeros_like(l_scr)
        acc_scr[...] = jnp.zeros_like(acc_scr)

    q = q_ref[0]                      # (H, tq, E) bf16; E^-0.5 already folded into Wq
    k = k_ref[0]                      # (H, tk, E) bf16
    v = v_ref[0]                      # (H, tk, E) bf16

    s = jnp.einsum('hqe,hke->hqk', q, k, preferred_element_type=jnp.float32)
    m_prev = m_scr[...]
    m_new = jnp.maximum(m_prev, jnp.max(s, axis=-1, keepdims=True))
    alpha = jnp.exp(m_prev - m_new)
    p = jnp.exp(s - m_new)
    l_scr[...] = alpha * l_scr[...] + jnp.sum(p, axis=-1, keepdims=True)
    acc_scr[...] = alpha * acc_scr[...] + jnp.einsum(
        'hqk,hke->hqe', p.astype(jnp.bfloat16), v, preferred_element_type=jnp.float32)
    m_scr[...] = m_new
    # TODO(synk): mask=True (causal masking via mask_) not implemented; spec path is mask=False.

    @pl.when(ki == pl.num_programs(2) - 1)
    def _finalize():
        out = acc_scr[...] * pl.reciprocal(l_scr[...], approx=True)    # (H, tq, E) f32
        out = out.astype(jnp.bfloat16)                                 # cast before relayout
        out = jnp.transpose(out, (1, 0, 2)).reshape(tq, H * E)         # (tq, H*E)
        att = jnp.dot(out, wu_ref[...], preferred_element_type=jnp.float32) + bu_ref[...]
        o_ref[0] = att.astype(o_ref.dtype)


# ----------------------------- VMEM budgeting ---------------------------------
def _vmem_limit_bytes(need_bytes):
    """Generation-aware scoped-VMEM limit: footprint + ~15% headroom, <=85% of HW."""
    cap = 64 * 2 ** 20  # conservative fallback (v7x per-TC VMEM)
    try:
        info = pltpu.get_tpu_info()
        cap = int(getattr(info, "vmem_capacity_bytes", cap))
    except Exception:
        pass
    return int(min(max(int(need_bytes * 1.15), 16 * 2 ** 20), int(cap * 0.85)))


# --------------------------------- wrapper ------------------------------------
def self_attention_wide(x, wk, wq, wv, wu, bu, heads, *, tq=128, tk=256, tt=256):
    """x: (B, T, E); wk/wq/wv: (H*E, E); wu: (E, H*E); bu: (E,). Returns (B, T, E)."""
    B, T, E = x.shape
    H = heads
    HE = H * E
    assert wk.shape == (HE, E) and wq.shape == (HE, E) and wv.shape == (HE, E)
    assert wu.shape == (E, HE) and bu.shape == (E,)

    tq = min(tq, T)
    tk = min(tk, T)
    tt = min(tt, T)
    assert T % tq == 0 and T % tk == 0 and T % tt == 0, (T, tq, tk, tt)
    assert (tq % 8 == 0 or tq == T) and (tk % 8 == 0 or tk == T) and (tt % 8 == 0 or tt == T)
    nq, nk, nt = T // tq, T // tk, T // tt

    # Parameter / activation prep (outside the kernels):
    #  * activations to bf16 (halve DMA traffic),
    #  * fold the e^-1/4 * e^-1/4 = E^-0.5 softmax scale into Wq,
    #  * fuse Q/K/V weights into one (E, 3*H*E) matrix, pre-transposed -> plain `x @ W`.
    x_bf = x.astype(jnp.bfloat16)
    scale = jnp.float32(E) ** jnp.float32(-0.5)
    wqkv = jnp.concatenate([(wq * scale).T, wk.T, wv.T], axis=1).astype(jnp.bfloat16)  # (E, 3HE)
    wu_t = wu.T.astype(jnp.bfloat16)                                                   # (HE, E)
    bu_row = bu.reshape(1, E).astype(jnp.float32)

    # ---------------- pass 1: Q/K/V projection, once per token ----------------
    proj_need = (2 * E * 3 * HE * 2          # double-buffered resident wqkv (bf16)
                 + 2 * tt * E * 2            # double-buffered x tile (bf16)
                 + 6 * H * tt * E * 2        # double-buffered q/k/v output tiles (bf16)
                 + tt * 3 * HE * (4 + 2)     # qkv f32 result + bf16 copy
                 + 3 * H * tt * E * 2)       # relayout intermediates
    qkv_shape = jax.ShapeDtypeStruct((B, H, T, E), jnp.bfloat16)
    q_p, k_p, v_p = pl.pallas_call(
        _qkv_proj_kernel,
        out_shape=(qkv_shape, qkv_shape, qkv_shape),
        grid_spec=pltpu.PrefetchScalarGridSpec(
            num_scalar_prefetch=0,
            grid=(B, nt),
            in_specs=[
                pl.BlockSpec((1, tt, E), lambda b, ti: (b, ti, 0)),       # x tile (bf16)
                pl.BlockSpec((E, 3 * HE), lambda b, ti: (0, 0)),          # fused wq|wk|wv
            ],
            out_specs=[
                pl.BlockSpec((1, H, tt, E), lambda b, ti: (b, 0, ti, 0)),
                pl.BlockSpec((1, H, tt, E), lambda b, ti: (b, 0, ti, 0)),
                pl.BlockSpec((1, H, tt, E), lambda b, ti: (b, 0, ti, 0)),
            ]),
        compiler_params=pltpu.CompilerParams(
            dimension_semantics=("parallel", "parallel"),
            vmem_limit_bytes=_vmem_limit_bytes(proj_need)),
    )(x_bf, wqkv)

    # ------------- pass 2: flash attention + fused unifyheads -----------------
    flash_need = (2 * HE * E * 2 + 2 * E * 4         # resident wu (bf16) + bias (f32), 2 bufs
                  + 2 * H * tq * E * 2               # double-buffered q tile (bf16)
                  + 4 * H * tk * E * 2               # double-buffered k + v tiles (bf16)
                  + 2 * tq * E * 4                   # double-buffered output tile (f32)
                  + H * tq * E * 4 + 2 * H * tq * 4  # acc + m/l scratch
                  + 3 * H * tq * tk * 4              # s / p / alpha working set
                  + H * tq * E * 4 + tq * HE * 2 + tq * E * 4)  # pv result + finalize temps
    out = pl.pallas_call(
        _flash_unify_kernel,
        out_shape=jax.ShapeDtypeStruct((B, T, E), x.dtype),
        grid_spec=pltpu.PrefetchScalarGridSpec(
            num_scalar_prefetch=0,
            grid=(B, nq, nk),
            in_specs=[
                pl.BlockSpec((1, H, tq, E), lambda b, qi, ki: (b, 0, qi, 0)),  # Q tile
                pl.BlockSpec((1, H, tk, E), lambda b, qi, ki: (b, 0, ki, 0)),  # K tile
                pl.BlockSpec((1, H, tk, E), lambda b, qi, ki: (b, 0, ki, 0)),  # V tile
                pl.BlockSpec((HE, E), lambda b, qi, ki: (0, 0)),               # wu (resident)
                pl.BlockSpec((1, E), lambda b, qi, ki: (0, 0)),                # bu (resident)
            ],
            out_specs=pl.BlockSpec((1, tq, E), lambda b, qi, ki: (b, qi, 0)),
            scratch_shapes=[
                pltpu.VMEM((H, tq, 1), jnp.float32),    # running max
                pltpu.VMEM((H, tq, 1), jnp.float32),    # running denominator
                pltpu.VMEM((H, tq, E), jnp.float32),    # output accumulator
            ]),
        compiler_params=pltpu.CompilerParams(
            dimension_semantics=("parallel", "parallel", "arbitrary"),
            vmem_limit_bytes=_vmem_limit_bytes(flash_need)),
    )(q_p, k_p, v_p, wu_t, bu_row)
    return out


# ---------------- pure-JAX reference (mirrors the PyTorch forward) -----------
def self_attention_wide_ref(x, wk, wq, wv, wu, bu, heads):
    b, t, e = x.shape
    h = heads
    keys = (x @ wk.T).reshape(b, t, h, e)
    queries = (x @ wq.T).reshape(b, t, h, e)
    values = (x @ wv.T).reshape(b, t, h, e)
    keys = jnp.transpose(keys, (0, 2, 1, 3)).reshape(b * h, t, e)
    queries = jnp.transpose(queries, (0, 2, 1, 3)).reshape(b * h, t, e)
    values = jnp.transpose(values, (0, 2, 1, 3)).reshape(b * h, t, e)
    queries = queries / e ** 0.25
    keys = keys / e ** 0.25
    dot = queries @ jnp.transpose(keys, (0, 2, 1))
    dot = jax.nn.softmax(dot, axis=2)
    out = (dot @ values).reshape(b, h, t, e)
    out = jnp.transpose(out, (0, 2, 1, 3)).reshape(b, t, h * e)
    return out @ wu.T + bu


if __name__ == "__main__":
    B, T, E, H = 2, 16, 32, 4   # small shapes; tq=tk=tt=8 exercises multi-tile grids

    key = jax.random.PRNGKey(0)
    kx, kk, kq, kv, ku = jax.random.split(key, 5)
    x = jax.random.normal(kx, (B, T, E), dtype=jnp.float32)
    wk = 0.1 * jax.random.normal(kk, (H * E, E), jnp.float32)
    wq = 0.1 * jax.random.normal(kq, (H * E, E), jnp.float32)
    wv = 0.1 * jax.random.normal(kv, (H * E, E), jnp.float32)
    wu = 0.1 * jax.random.normal(ku, (E, H * E), jnp.float32)
    bu = 0.01 * jnp.arange(E, dtype=jnp.float32)

    out = self_attention_wide(x, wk, wq, wv, wu, bu, heads=H, tq=8, tk=8, tt=8)
    out = jax.block_until_ready(out)

    ref = self_attention_wide_ref(x, wk, wq, wv, wu, bu, heads=H)
    assert out.shape == (B, T, E), out.shape
    max_err = jnp.max(jnp.abs(out - ref))
    assert jnp.allclose(out, ref, atol=3e-2, rtol=3e-2), max_err  # bf16-MXU tolerance

    print("KERNEL_OK")
</pallas_src>

<mosaic_0001>
module attributes {stable_mosaic.version = 11 : i64} {
  func.func @_qkv_proj_kernel(%arg0: i32, %arg1: i32, %arg2: memref<1x8x32xbf16, #tpu.memory_space<vmem>>, %arg3: memref<32x384xbf16, #tpu.memory_space<vmem>>, %arg4: memref<1x4x8x32xbf16, #tpu.memory_space<vmem>>, %arg5: memref<1x4x8x32xbf16, #tpu.memory_space<vmem>>, %arg6: memref<1x4x8x32xbf16, #tpu.memory_space<vmem>>) attributes {dimension_semantics = [#tpu.dimension_semantics<parallel>, #tpu.dimension_semantics<parallel>], iteration_bounds = array<i64: 2, 2>, scalar_prefetch = 0 : i64, scratch_operands = 0 : i64, tpu.core_type = #tpu.core_type<tc>, window_params = [{transform_indices = @transform_0, window_bounds = array<i64: 1, 8, 32>}, {pipeline_mode = #tpu.pipeline_mode<synchronous>, transform_indices = @transform_1, window_bounds = array<i64: 32, 384>}, {transform_indices = @transform_2, window_bounds = array<i64: 1, 4, 8, 32>}, {transform_indices = @transform_3, window_bounds = array<i64: 1, 4, 8, 32>}, {transform_indices = @transform_4, window_bounds = array<i64: 1, 4, 8, 32>}]} {
    %c0 = arith.constant 0 : index
    %c0_0 = arith.constant 0 : index
    %c0_1 = arith.constant 0 : index
    %0 = vector.load %arg2[%c0, %c0_0, %c0_1] : memref<1x8x32xbf16, #tpu.memory_space<vmem>>, vector<1x8x32xbf16>
    %1 = vector.shape_cast %0 : vector<1x8x32xbf16> to vector<8x32xbf16>
    %c0_2 = arith.constant 0 : index
    %c0_3 = arith.constant 0 : index
    %2 = vector.load %arg3[%c0_2, %c0_3] : memref<32x384xbf16, #tpu.memory_space<vmem>>, vector<32x384xbf16>
    %cst = arith.constant dense<0.000000e+00> : vector<8x384xf32>
    %3 = tpu.matmul %1, %2, %cst {dimension_numbers = #tpu.dot_dimension_numbers<[1], [0], [0], [1], [0, 0, 1, 1], [], []>} : vector<8x32xbf16>, vector<32x384xbf16>, vector<8x384xf32> -> vector<8x384xf32>
    %4 = arith.truncf %3 : vector<8x384xf32> to vector<8x384xbf16>
    %5 = vector.extract_strided_slice %4 {offsets = [0, 0], sizes = [8, 128], strides = [1, 1]} : vector<8x384xbf16> to vector<8x128xbf16>
    %6 = vector.shape_cast %5 : vector<8x128xbf16> to vector<8x4x32xbf16>
    %7 = tpu.transpose %6, [1, 0, 2] : vector<8x4x32xbf16> -> vector<4x8x32xbf16>
    %c0_4 = arith.constant 0 : index
    %c0_5 = arith.constant 0 : index
    %c0_6 = arith.constant 0 : index
    %c0_7 = arith.constant 0 : index
    %8 = vector.load %arg4[%c0_4, %c0_5, %c0_6, %c0_7] : memref<1x4x8x32xbf16, #tpu.memory_space<vmem>>, vector<1x4x8x32xbf16>
    %9 = vector.shape_cast %8 : vector<1x4x8x32xbf16> to vector<4x8x32xbf16>
    %10 = vector.shape_cast %7 : vector<4x8x32xbf16> to vector<1x4x8x32xbf16>
    tpu.vector_store %arg4[%c0_4, %c0_5, %c0_6, %c0_7], %10 {strides = array<i32>} : memref<1x4x8x32xbf16, #tpu.memory_space<vmem>>, vector<1x4x8x32xbf16>,
    %11 = vector.extract_strided_slice %4 {offsets = [0, 128], sizes = [8, 128], strides = [1, 1]} : vector<8x384xbf16> to vector<8x128xbf16>
    %12 = vector.shape_cast %11 : vector<8x128xbf16> to vector<8x4x32xbf16>
    %13 = tpu.transpose %12, [1, 0, 2] : vector<8x4x32xbf16> -> vector<4x8x32xbf16>
    %c0_8 = arith.constant 0 : index
    %c0_9 = arith.constant 0 : index
    %c0_10 = arith.constant 0 : index
    %c0_11 = arith.constant 0 : index
    %14 = vector.load %arg5[%c0_8, %c0_9, %c0_10, %c0_11] : memref<1x4x8x32xbf16, #tpu.memory_space<vmem>>, vector<1x4x8x32xbf16>
    %15 = vector.shape_cast %14 : vector<1x4x8x32xbf16> to vector<4x8x32xbf16>
    %16 = vector.shape_cast %13 : vector<4x8x32xbf16> to vector<1x4x8x32xbf16>
    tpu.vector_store %arg5[%c0_8, %c0_9, %c0_10, %c0_11], %16 {strides = array<i32>} : memref<1x4x8x32xbf16, #tpu.memory_space<vmem>>, vector<1x4x8x32xbf16>,
    %17 = vector.extract_strided_slice %4 {offsets = [0, 256], sizes = [8, 128], strides = [1, 1]} : vector<8x384xbf16> to vector<8x128xbf16>
    %18 = vector.shape_cast %17 : vector<8x128xbf16> to vector<8x4x32xbf16>
    %19 = tpu.transpose %18, [1, 0, 2] : vector<8x4x32xbf16> -> vector<4x8x32xbf16>
    %c0_12 = arith.constant 0 : index
    %c0_13 = arith.constant 0 : index
    %c0_14 = arith.constant 0 : index
    %c0_15 = arith.constant 0 : index
    %20 = vector.load %arg6[%c0_12, %c0_13, %c0_14, %c0_15] : memref<1x4x8x32xbf16, #tpu.memory_space<vmem>>, vector<1x4x8x32xbf16>
    %21 = vector.shape_cast %20 : vector<1x4x8x32xbf16> to vector<4x8x32xbf16>
    %22 = vector.shape_cast %19 : vector<4x8x32xbf16> to vector<1x4x8x32xbf16>
    tpu.vector_store %arg6[%c0_12, %c0_13, %c0_14, %c0_15], %22 {strides = array<i32>} : memref<1x4x8x32xbf16, #tpu.memory_space<vmem>>, vector<1x4x8x32xbf16>,
    return
  }
  func.func @transform_0(%arg0: i32, %arg1: i32) -> (i32, i32, i32) {
    %c0_i32 = arith.constant 0 : i32
    %c0_i32_0 = arith.constant 0 : i32
    return %arg0, %arg1, %c0_i32 : i32, i32, i32
  }
  func.func @transform_1(%arg0: i32, %arg1: i32) -> (i32, i32) {
    %c0_i32 = arith.constant 0 : i32
    %c0_i32_0 = arith.constant 0 : i32
    %c0_i32_1 = arith.constant 0 : i32
    return %c0_i32, %c0_i32_0 : i32, i32
  }
  func.func @transform_2(%arg0: i32, %arg1: i32) -> (i32, i32, i32, i32) {
    %c0_i32 = arith.constant 0 : i32
    %c0_i32_0 = arith.constant 0 : i32
    %c0_i32_1 = arith.constant 0 : i32
    return %arg0, %c0_i32, %arg1, %c0_i32_0 : i32, i32, i32, i32
  }
  func.func @transform_3(%arg0: i32, %arg1: i32) -> (i32, i32, i32, i32) {
    %c0_i32 = arith.constant 0 : i32
    %c0_i32_0 = arith.constant 0 : i32
    %c0_i32_1 = arith.constant 0 : i32
    return %arg0, %c0_i32, %arg1, %c0_i32_0 : i32, i32, i32, i32
  }
  func.func @transform_4(%arg0: i32, %arg1: i32) -> (i32, i32, i32, i32) {
    %c0_i32 = arith.constant 0 : i32
    %c0_i32_0 = arith.constant 0 : i32
    %c0_i32_1 = arith.constant 0 : i32
    return %arg0, %c0_i32, %arg1, %c0_i32_0 : i32, i32, i32, i32
  }
}

</mosaic_0001>

<llo_original>
// kernel: tpu_custom_call.1
$region0: #{tpu_custom_call.1}
  #allocation0 [shape = 'u32[]', space=smem, size = 0x4, offset = 0x4, fixed_abs, tag = 'smem constant byte address 0x4 - core index']
  #allocation1 [shape = 'u32[144,128]{1,0:T(1,128)}', space=vmem, size = 0x12000, scoped, tag = 'internal scratch']
  %s0 = inlined_call_operand.hbm [shape: bf16[2,16,32], index: 0, kind: input, shape index: {}]
  %s1 = inlined_call_operand.hbm [shape: bf16[32,384], index: 1, kind: input, shape index: {}]
  %s2 = inlined_call_operand.hbm [shape: bf16[2,4,16,32], index: 2, kind: output, shape index: {0}]
  %s3 = inlined_call_operand.hbm [shape: bf16[2,4,16,32], index: 3, kind: output, shape index: {1}]
  %s4 = inlined_call_operand.hbm [shape: bf16[2,4,16,32], index: 4, kind: output, shape index: {2}]
  %5 = xla_tuple %s2, %s3, %s4
  %s6 = sld [smem:[#allocation0]]
  $region65: #{tpu_custom_call.1} parent=0
    _
  %s8 = ssub.s32 1, %s6
  %s9 = scalar_select 0, %s8, %s6
  $region1: #{tpu_custom_call.1} parent=0
    #allocation2 [shape = 'u8[4096]{0}', space=vmem, size = 0x1000, scoped, tag = 'input window, operand 0']
    #allocation3 [shape = 's32[2]{0}', space=sflag, size = 0x8, scoped, tag = 'scoped memory for tpu_custom_call.1']
    #allocation4 [shape = 's32[2]{0}', space=sflag, size = 0x8, scoped, tag = 'scoped memory for tpu_custom_call.1']
    #allocation5 [shape = 'u8[24576]{0}', space=vmem, size = 0x6000, scoped, tag = 'input window, operand 1, single buffered']
    #allocation6 [shape = 's32[1]{0}', space=sflag, size = 0x4, scoped, tag = 'scoped memory for tpu_custom_call.1']
    #allocation7 [shape = 'u8[16384]{0}', space=vmem, size = 0x4000, scoped, tag = 'output window, operand 0']
    #allocation8 [shape = 'u8[16384]{0}', space=vmem, size = 0x4000, scoped, tag = 'output window, operand 1']
    #allocation9 [shape = 's32[2]{0}', space=sflag, size = 0x8, scoped, tag = 'scoped memory for tpu_custom_call.1']
    #allocation10 [shape = 'u8[16384]{0}', space=vmem, size = 0x4000, scoped, tag = 'output window, operand 2']
    %10 = vsyncpa [#allocation3], 0
    %s11 = scalar_lea.sflag [#allocation3], 1
    %12 = vsyncpa %s11, 0
    %13 = vsyncpa [#allocation6], 0
    %14 = vsyncpa [#allocation4], 0
    %s15 = scalar_lea.sflag [#allocation4], 1
    %16 = vsyncpa %s15, 0
    %17 = vsyncpa [#allocation9], 0
    %s18 = scalar_lea.sflag [#allocation9], 1
    %19 = vsyncpa %s18, 0
    loop: start=0, step=1, limit=6
    $region2: #{tpu_custom_call.1} parent=1 // loop_pre_header
      _
    $region3: #{tpu_custom_call.1} parent=1 // loop_header
      %s21 = sphi 0, %s25
      %p22 = scmp.ge.s32.totalorder %s21, 6
      %s28 = sphi 0, %s40
      %s29 = sphi 0, %s36
      %s30 = sphi 0, %s28
      %s31 = sphi 0, %s29
      %s32 = sphi 0, %s30
      %s33 = sphi 0, %s31
      %s45 = sphi 0, %s47
      %s48 = sphi 0, %s45
      %s49 = sphi 0, %s48
      %s65 = sphi 0, %s49
      %s69 = sphi 0, %s69
      %s71 = sphi 0, %s69
      %s72 = sphi 0, %s71
      %s86 = sphi 0, %s72
      %s94 = sphi 0, %s96
      %s97 = sphi 0, %s94
      %s98 = sphi 0, %s97
      %s114 = sphi 0, %s98
      %s122 = sphi 0, %s124
      %s125 = sphi 0, %s122
      %s126 = sphi 0, %s125
      %s142 = sphi 0, %s126
      %s150 = sphi 0, %s152
      %s153 = sphi 0, %s150
      %s154 = sphi 0, %s153
      %s170 = sphi 0, %s154
    $region4: #{tpu_custom_call.1} parent=1 // loop_header_branch
      %24 = sbr.rel (%p22) target = $region8
    $region5: #{tpu_custom_call.1} parent=1 // loop_body
      %s26 = ssub.s32 %s21, 1
      %s27 = ssub.s32 %s21, 2
      %s34 = sadd.s32 1, %s29
      %p35 = scmp.ge.s32.totalorder %s34, 2
      %s36 = scalar_select %p35, 0, %s34
      %s37 = sadd.s32 1, %s28
      %s38 = scalar_select %p35, %s37, %s28
      %p39 = scmp.ge.s32.totalorder %s38, 2
      %s40 = scalar_select %p39, 0, %s38
      %s41 = ssub.s32 %s28, %s40
      %s42 = ssub.s32 %s29, %s36
      %s43 = sor.u32 %s41, %s42
      %p44 = scmp.eq.s32.totalorder %s43, 0
      %s46 = sadd.s32 %s45, 1
      %s47 = scalar_select %p44, %s45, %s46
      %p50 = pneg %p44
      %p51 = scmp.eq.s32.totalorder %s21, 3
      %p52 = por %p50, %p51
      %p53 = scmp.ne.s32.totalorder %s45, %s48
      %p54 = scmp.eq.s32.totalorder %s21, 0
      %p55 = por %p53, %p54
      %p56 = scmp.ne.s32.totalorder %s45, %s48
      %p57 = scmp.eq.s32.totalorder %s26, 3
      %p58 = por %p56, %p57
      %p59 = scmp.ne.s32.totalorder %s48, %s49
      %p60 = scmp.eq.s32.totalorder %s26, 0
      %p61 = por %p59, %p60
      %p62 = scmp.ne.s32.totalorder %s48, %s49
      %p63 = scmp.eq.s32.totalorder %s27, 3
      %p64 = por %p62, %p63
      %p66 = scmp.ne.s32.totalorder %s49, %s65
      %p67 = scmp.eq.s32.totalorder %s27, 0
      %p68 = por %p66, %p67
      %s70 = sadd.s32 %s69, 1
      %p73 = scmp.eq.s32.totalorder %s21, 3
      %p74 = scmp.ne.s32.totalorder %s69, %s71
      %p75 = scmp.eq.s32.totalorder %s21, 0
      %p76 = por %p74, %p75
      %p77 = scmp.ne.s32.totalorder %s69, %s71
      %p78 = scmp.eq.s32.totalorder %s26, 3
      %p79 = por %p77, %p78
      %p80 = scmp.ne.s32.totalorder %s71, %s72
      %p81 = scmp.eq.s32.totalorder %s26, 0
      %p82 = por %p80, %p81
      %p83 = scmp.ne.s32.totalorder %s71, %s72
      %p84 = scmp.eq.s32.totalorder %s27, 3
      %p85 = por %p83, %p84
      %p87 = scmp.ne.s32.totalorder %s72, %s86
      %p88 = scmp.eq.s32.totalorder %s27, 0
      %p89 = por %p87, %p88
      %s90 = ssub.s32 %s28, %s40
      %s91 = ssub.s32 %s29, %s36
      %s92 = sor.u32 %s90, %s91
      %p93 = scmp.eq.s32.totalorder %s92, 0
      %s95 = sadd.s32 %s94, 1
      %s96 = scalar_select %p93, %s94, %s95
      %p99 = pneg %p93
      %p100 = scmp.eq.s32.totalorder %s21, 3
      %p101 = por %p99, %p100
      %p102 = scmp.ne.s32.totalorder %s94, %s97
      %p103 = scmp.eq.s32.totalorder %s21, 0
      %p104 = por %p102, %p103
      %p105 = scmp.ne.s32.totalorder %s94, %s97
      %p106 = scmp.eq.s32.totalorder %s26, 3
      %p107 = por %p105, %p106
      %p108 = scmp.ne.s32.totalorder %s97, %s98
      %p109 = scmp.eq.s32.totalorder %s26, 0
      %p110 = por %p108, %p109
      %p111 = scmp.ne.s32.totalorder %s97, %s98
      %p112 = scmp.eq.s32.totalorder %s27, 3
      %p113 = por %p111, %p112
      %p115 = scmp.ne.s32.totalorder %s98, %s114
      %p116 = scmp.eq.s32.totalorder %s27, 0
      %p117 = por %p115, %p116
      %s118 = ssub.s32 %s28, %s40
      %s119 = ssub.s32 %s29, %s36
      %s120 = sor.u32 %s118, %s119
      %p121 = scmp.eq.s32.totalorder %s120, 0
      %s123 = sadd.s32 %s122, 1
      %s124 = scalar_select %p121, %s122, %s123
      %p127 = pneg %p121
      %p128 = scmp.eq.s32.totalorder %s21, 3
      %p129 = por %p127, %p128
      %p130 = scmp.ne.s32.totalorder %s122, %s125
      %p131 = scmp.eq.s32.totalorder %s21, 0
      %p132 = por %p130, %p131
      %p133 = scmp.ne.s32.totalorder %s122, %s125
      %p134 = scmp.eq.s32.totalorder %s26, 3
      %p135 = por %p133, %p134
      %p136 = scmp.ne.s32.totalorder %s125, %s126
      %p137 = scmp.eq.s32.totalorder %s26, 0
      %p138 = por %p136, %p137
      %p139 = scmp.ne.s32.totalorder %s125, %s126
      %p140 = scmp.eq.s32.totalorder %s27, 3
      %p141 = por %p139, %p140
      %p143 = scmp.ne.s32.totalorder %s126, %s142
      %p144 = scmp.eq.s32.totalorder %s27, 0
      %p145 = por %p143, %p144
      %s146 = ssub.s32 %s28, %s40
      %s147 = ssub.s32 %s29, %s36
      %s148 = sor.u32 %s146, %s147
      %p149 = scmp.eq.s32.totalorder %s148, 0
      %s151 = sadd.s32 %s150, 1
      %s152 = scalar_select %p149, %s150, %s151
      %p155 = pneg %p149
      %p156 = scmp.eq.s32.totalorder %s21, 3
      %p157 = por %p155, %p156
      %p158 = scmp.ne.s32.totalorder %s150, %s153
      %p159 = scmp.eq.s32.totalorder %s21, 0
      %p160 = por %p158, %p159
      %p161 = scmp.ne.s32.totalorder %s150, %s153
      %p162 = scmp.eq.s32.totalorder %s26, 3
      %p163 = por %p161, %p162
      %p164 = scmp.ne.s32.totalorder %s153, %s154
      %p165 = scmp.eq.s32.totalorder %s26, 0
      %p166 = por %p164, %p165
      %p167 = scmp.ne.s32.totalorder %s153, %s154
      %p168 = scmp.eq.s32.totalorder %s27, 3
      %p169 = por %p167, %p168
      %p171 = scmp.ne.s32.totalorder %s154, %s170
      %p172 = scmp.eq.s32.totalorder %s27, 0
      %p173 = por %p171, %p172
      %p174 = scmp.le.s32.totalorder 1, %s21
      %p175 = scmp.lt.s32.totalorder %s21, 5
      %p176 = pnand %p174, %p175
      %p177 = pneg %p176
      // Predicated region
      $region9: #{tpu_custom_call.1} parent=5 // pred_check
        _
      $region10: #{tpu_custom_call.1} parent=5 // pred_check_branch
        %179 = sbr.rel (%p176) target = $region12
      $region11: #{tpu_custom_call.1} parent=5 // pred_region
        %s180 = ssub.s32 %s21, 1
        // Predicated region
        $region13: #{tpu_custom_call.1} parent=11 // pred_check
          %p181 = pneg %p82
        $region14: #{tpu_custom_call.1} parent=11 // pred_check_branch
          %183 = sbr.rel (%p181) target = $region16
        $region15: #{tpu_custom_call.1} parent=11 // pred_region
          %s185 = ssub.s32 768, 768
          %186 = vsyncadd [#allocation6], %s185
          %s187 = sshll.u32 [#allocation5], 4
          %s188 = int_to_ptr.vmem [resolvable:$true] %s187
          %193 = dma.hbm_to_vmem [thread:$0]  %s1, 768, %s188, [#allocation6], 192, 192, 12
        $region16: #{tpu_custom_call.1} parent=11 // pred_fallthru
          _
      $region12: #{tpu_custom_call.1} parent=5 // pred_fallthru
        _
      %p194 = scmp.lt.s32.totalorder %s21, 4
      // Predicated region
      $region17: #{tpu_custom_call.1} parent=5 // pred_check
        %p195 = pneg %p194
      $region18: #{tpu_custom_call.1} parent=5 // pred_check_branch
        %197 = sbr.rel (%p195) target = $region20
      $region19: #{tpu_custom_call.1} parent=5 // pred_region
        // Predicated region
        $region21: #{tpu_custom_call.1} parent=19 // pred_check
          %p198 = pneg %p55
        $region22: #{tpu_custom_call.1} parent=19 // pred_check_branch
          %200 = sbr.rel (%p198) target = $region24
        $region23: #{tpu_custom_call.1} parent=19 // pred_region
          %s201 = sand.u32 %s45, 1
          %s202 = scalar_lea.sflag [#allocation3], %s201
          %s203 = sand.u32 %s45, 1
          %s204 = smul.addr %s203, 4
          %s205 = scalar_lea.vmem [#allocation2], %s204
          %s207 = ssub.s32 64, 64
          %208 = vsyncadd %s202, %s207
          %s209 = smul.addr %s28, 2
          %s210 = sadd.s32 %s29, %s209
          %s211 = smul.addr %s210, 64
          %s212 = scalar_lea.hbm %s0, %s211
          %s214 = sshll.u32 %s205, 4
          %s215 = int_to_ptr.vmem [resolvable:$true] %s214
          %217 = dma.hbm_to_vmem [thread:$0]  %s212, 64, %s215, %s202
        $region24: #{tpu_custom_call.1} parent=19 // pred_fallthru
          _
      $region20: #{tpu_custom_call.1} parent=5 // pred_fallthru
        _
      %p218 = scmp.le.s32.totalorder 1, %s21
      %p219 = scmp.lt.s32.totalorder %s21, 5
      %p220 = pnand %p218, %p219
      %p221 = pneg %p220
      // Predicated region
      $region25: #{tpu_custom_call.1} parent=5 // pred_check
        _
      $region26: #{tpu_custom_call.1} parent=5 // pred_check_branch
        %223 = sbr.rel (%p220) target = $region28
      $region27: #{tpu_custom_call.1} parent=5 // pred_region
        %s224 = ssub.s32 %s21, 1
        %s225 = sand.u32 %s48, 1
        %s226 = scalar_lea.sflag [#allocation3], %s225
        %s227 = sand.u32 %s48, 1
        %s228 = smul.addr %s227, 4
        %s229 = scalar_lea.vmem [#allocation2], %s228
        // Predicated region
        $region29: #{tpu_custom_call.1} parent=27 // pred_check
          %p230 = pneg %p61
        $region30: #{tpu_custom_call.1} parent=27 // pred_check_branch
          %232 = sbr.rel (%p230) target = $region32
        $region31: #{tpu_custom_call.1} parent=27 // pred_region
          %233 = dma.done %s226, 64
        $region32: #{tpu_custom_call.1} parent=27 // pred_fallthru
          _
        // Predicated region
        $region33: #{tpu_custom_call.1} parent=27 // pred_check
          %p234 = pneg %p82
        $region34: #{tpu_custom_call.1} parent=27 // pred_check_branch
          %236 = sbr.rel (%p234) target = $region36
        $region35: #{tpu_custom_call.1} parent=27 // pred_region
          %237 = dma.done [#allocation6], 768
        $region36: #{tpu_custom_call.1} parent=27 // pred_fallthru
          _
        %s238 = sand.u32 %s48, 1
        %s239 = scalar_lea.sflag [#allocation3], %s238
        %s240 = sand.u32 %s48, 1
        %s241 = smul.addr %s240, 4
        %s242 = scalar_lea.vmem [#allocation2], %s241
        %p243 = pneg %p61
        %p244 = pneg %p58
        %p245 = pneg %p82
        %p246 = pneg %p79
        %p247 = pneg %p110
        %p248 = pneg %p107
        %s249 = sand.u32 %s97, 1
        %s250 = scalar_lea.sflag [#allocation4], %s249
        %s251 = sand.u32 %s97, 1
        %s252 = smul.addr %s251, 16
        %s253 = scalar_lea.vmem [#allocation7], %s252
        %p254 = pneg %p138
        %p255 = pneg %p135
        %s256 = sand.u32 %s26, 1
        %s257 = scalar_lea.sflag [#allocation9], %s256
        %s258 = sand.u32 %s125, 1
        %s259 = smul.addr %s258, 16
        %s260 = scalar_lea.vmem [#allocation8], %s259
        %p261 = pneg %p166
        %p262 = pneg %p163
        %s263 = sand.u32 %s26, 1
        %s264 = scalar_lea.sflag [#allocation9], %s263
        %s265 = sand.u32 %s153, 1
        %s266 = smul.addr %s265, 16
        %s267 = scalar_lea.vmem [#allocation10], %s266
        %v269 = vld [vmem:[%s229] sm:$0xf]
        %v270 = vld [vmem:[#allocation5] sm:$0xff]
        %v271 = vld [vmem:[#allocation5 + $0x8] sm:$0xf]
        %v272 = vld [vmem:[#allocation5 + $0xc] sm:$0xff]
        %v273 = vld [vmem:[#allocation5 + $0x14] sm:$0xf]
        %v274 = vld [vmem:[#allocation5 + $0x18] sm:$0xff]
        %v275 = vld [vmem:[#allocation5 + $0x20] sm:$0xf]
        %v276 = vld [vmem:[#allocation5 + $0x24] sm:$0xff]
        %v277 = vld [vmem:[#allocation5 + $0x2c] sm:$0xf]
        %v286 = vunpack.c.l.b16 %v270
        %v287 = vunpack.c.h.b16 %v270
        %v288 = vunpack.c.l.b16 %v271
        %v289 = vunpack.c.l.b16 %v272
        %v290 = vunpack.c.h.b16 %v272
        %v291 = vunpack.c.l.b16 %v273
        %v292 = vunpack.c.l.b16 %v274
        %v293 = vunpack.c.h.b16 %v274
        %v294 = vunpack.c.l.b16 %v275
        %v295 = vunpack.c.l.b16 %v276
        %v296 = vunpack.c.h.b16 %v276
        %v297 = vunpack.c.l.b16 %v277
        %v298 = vpack.c.b16 %v289, %v286
        %v299 = vpack.c.b16 %v290, %v287
        %v300 = vpack.c.b16 %v291, %v288
        %v301 = vpack.c.b16 %v295, %v292
        %v302 = vpack.c.b16 %v296, %v293
        %v303 = vpack.c.b16 %v297, %v294
        %vm310 = vcmask 261120
        %v312 = vsel %vm310, %v269, 0
        %314 = vmatprep.subr.bf16.mxu0 %v299
        %315 = vmatpush1.bf16.msra.mxu0 %v298
        %316 = vmatprep.subr.bf16.mxu0 %v302
        %317 = vmatpush1.bf16.msra.mxu0 %v301
        %318 = vmatprep.subr.bf16.mxu0 0
        %319 = vmatpush1.bf16.msra.mxu0 0
        %320 = vmatprep.subr.bf16.mxu0 0
        %321 = vmatpush1.bf16.msra.mxu0 0
        %322 = vmatprep.subr.bf16.mxu0 0
        %323 = vmatpush1.bf16.msra.mxu0 0
        %324 = vmatprep.subr.bf16.mxu0 0
        %325 = vmatpush1.bf16.msra.mxu0 0
        %326 = vmatprep.subr.bf16.mxu0 0
        %327 = vmatpush1.bf16.msra.mxu0 0
        %328 = vmatprep.subr.bf16.mxu0 0
        %329 = vmatpush1.bf16.msra.mxu0 0
        %330 = vmatprep.subr.bf16.mxu0 0
        %331 = vmatpush1.bf16.msra.mxu0 0
        %332 = vmatprep.subr.bf16.mxu0 0
        %333 = vmatpush1.bf16.msra.mxu0 0
        %334 = vmatprep.subr.bf16.mxu0 0
        %335 = vmatpush1.bf16.msra.mxu0 0
        %336 = vmatprep.subr.bf16.mxu0 0
        %337 = vmatpush1.bf16.msra.mxu0 0
        %338 = vmatprep.subr.bf16.mxu0 0
        %339 = vmatpush1.bf16.msra.mxu0 0
        %340 = vmatprep.subr.bf16.mxu0 0
        %341 = vmatpush1.bf16.msra.mxu0 0
        %342 = vmatprep.subr.bf16.mxu0 0
        %343 = vmatpush1.bf16.msra.mxu0 0
        %344 = vmatprep.subr.bf16.mxu0 0
        %345 = vmatpush1.bf16.msra.mxu0 0
        %346 = vmatprep.mubr.bf16.mxu0 0
        %347 = vmatmul.mubr.bf16.gmra.mrb[0].mxu0 %v312
        %v348 = vpop.f32.mrb[0].mxu0
        %v349 = vadd.f32 0.0, %v348
        %v350 = vpop.f32.mrb[0].mxu0
        %v351 = vadd.f32 0.0, %v350
        %v352 = vpop.f32.mrb[0].mxu0
        %v353 = vpop.f32.mrb[0].mxu0
        %354 = vdwg.mxu0
        %355 = vmatprep.subr.bf16.mxu0 0
        %356 = vmatpush1.bf16.msra.mxu0 %v300
        %357 = vmatprep.subr.bf16.mxu0 0
        %358 = vmatpush1.bf16.msra.mxu0 %v303
        %359 = vmatprep.subr.bf16.mxu0 0
        %360 = vmatpush1.bf16.msra.mxu0 0
        %361 = vmatprep.subr.bf16.mxu0 0
        %362 = vmatpush1.bf16.msra.mxu0 0
        %363 = vmatprep.subr.bf16.mxu0 0
        %364 = vmatpush1.bf16.msra.mxu0 0
        %365 = vmatprep.subr.bf16.mxu0 0
        %366 = vmatpush1.bf16.msra.mxu0 0
        %367 = vmatprep.subr.bf16.mxu0 0
        %368 = vmatpush1.bf16.msra.mxu0 0
        %369 = vmatprep.subr.bf16.mxu0 0
        %370 = vmatpush1.bf16.msra.mxu0 0
        %371 = vmatprep.subr.bf16.mxu0 0
        %372 = vmatpush1.bf16.msra.mxu0 0
        %373 = vmatprep.subr.bf16.mxu0 0
        %374 = vmatpush1.bf16.msra.mxu0 0
        %375 = vmatprep.subr.bf16.mxu0 0
        %376 = vmatpush1.bf16.msra.mxu0 0
        %377 = vmatprep.subr.bf16.mxu0 0
        %378 = vmatpush1.bf16.msra.mxu0 0
        %379 = vmatprep.subr.bf16.mxu0 0
        %380 = vmatpush1.bf16.msra.mxu0 0
        %381 = vmatprep.subr.bf16.mxu0 0
        %382 = vmatpush1.bf16.msra.mxu0 0
        %383 = vmatprep.subr.bf16.mxu0 0
        %384 = vmatpush1.bf16.msra.mxu0 0
        %385 = vmatprep.subr.bf16.mxu0 0
        %386 = vmatpush1.bf16.msra.mxu0 0
        %387 = vmatprep.mubr.bf16.mxu0 0
        %388 = vmatmul.mubr.bf16.gmra.mrb[0].mxu0 %v312
        %v389 = vpop.f32.mrb[0].mxu0
        %v390 = vadd.f32 0.0, %v389
        %v391 = vpop.f32.mrb[0].mxu0
        %v392 = vpop.f32.mrb[0].mxu0
        %v393 = vpop.f32.mrb[0].mxu0
        %394 = vdwg.mxu0
        %v395 = vpack.c.bf16 %v349, %v349
        %v396 = vpack.c.bf16 %v351, %v351
        %v397 = vpack.c.bf16 %v390, %v390
        %399 = vrot.lane.b32.xlu0 %v395, 96
        %v400 = vpop.permute.xlu0 %399
        %401 = vrot.lane.b32.xlu0 %v395, 64
        %v402 = vpop.permute.xlu0 %401
        %403 = vrot.lane.b32.xlu0 %v395, 32
        %v404 = vpop.permute.xlu0 %403
        %v406 = vunpack.c.l.s4 1983009808
        %v407 = vunpack.c.0.s8 %v406
        %v408 = vlaneseq
        %v409 = vshrl.u32 %v408, 7
        %v410 = vsub.s32 %v407, %v409
        %v411 = vrot.slane %v395, %v410
        %v414 = vunpack.c.l.s4 1983009808
        %v415 = vunpack.c.0.s8 %v414
        %v416 = vlaneseq
        %v417 = vshrl.u32 %v416, 7
        %v418 = vsub.s32 %v415, %v417
        %v419 = vrot.slane %v402, %v418
        %v420 = vcombine.low %v411, %v419
        %v421 = vcombine.high %v411, %v419
        %v423 = vunpack.c.l.s4 1934713408
        %v424 = vunpack.c.0.s8 %v423
        %v425 = vlaneseq
        %v426 = vshrl.u32 %v425, 7
        %v427 = vsub.s32 %v424, %v426
        %v428 = vrot.slane %v420, %v427
        %v430 = vunpack.c.l.s4 1934713408
        %v431 = vunpack.c.0.s8 %v430
        %v432 = vlaneseq
        %v433 = vshrl.u32 %v432, 7
        %v434 = vsub.s32 %v431, %v433
        %v435 = vrot.slane %v421, %v434
        %v436 = vcombine.high %v428, 0
        %v437 = vcombine.high %v435, 0
        %v440 = vunpack.c.l.s4 1983009808
        %v441 = vunpack.c.0.s8 %v440
        %v442 = vlaneseq
        %v443 = vshrl.u32 %v442, 7
        %v444 = vsub.s32 %v441, %v443
        %v445 = vrot.slane %v400, %v444
        %v448 = vunpack.c.l.s4 1983009808
        %v449 = vunpack.c.0.s8 %v448
        %v450 = vlaneseq
        %v451 = vshrl.u32 %v450, 7
        %v452 = vsub.s32 %v449, %v451
        %v453 = vrot.slane %v404, %v452
        %v454 = vcombine.low %v445, %v453
        %v455 = vcombine.high %v445, %v453
        %v457 = vunpack.c.l.s4 1934713408
        %v458 = vunpack.c.0.s8 %v457
        %v459 = vlaneseq
        %v460 = vshrl.u32 %v459, 7
        %v461 = vsub.s32 %v458, %v460
        %v462 = vrot.slane %v454, %v461
        %v464 = vunpack.c.l.s4 1934713408
        %v465 = vunpack.c.0.s8 %v464
        %v466 = vlaneseq
        %v467 = vshrl.u32 %v466, 7
        %v468 = vsub.s32 %v465, %v467
        %v469 = vrot.slane %v455, %v468
        %v470 = vcombine.high %v462, 0
        %v471 = vcombine.high %v469, 0
        %v474 = vpack.i.b16 %v462, %v428
        %v476 = vshrl.u32 %v428, 16
        %v477 = vshrl.u32 %v462, 16
        %v478 = vpack.i.b16 %v477, %v476
        %v482 = vpack.i.b16 %v470, %v436
        %v484 = vshrl.u32 %v436, 16
        %v485 = vshrl.u32 %v470, 16
        %v486 = vpack.i.b16 %v485, %v484
        %v490 = vpack.i.b16 %v469, %v435
        %v492 = vshrl.u32 %v435, 16
        %v493 = vshrl.u32 %v469, 16
        %v494 = vpack.i.b16 %v493, %v492
        %v498 = vpack.i.b16 %v471, %v437
        %v500 = vshrl.u32 %v437, 16
        %v501 = vshrl.u32 %v471, 16
        %v502 = vpack.i.b16 %v501, %v500
        %v504 = vcombine.low %v474, %v490
        %v506 = vunpack.c.l.s4 1983009808
        %v507 = vunpack.c.0.s8 %v506
        %v508 = vlaneseq
        %v509 = vshrl.u32 %v508, 7
        %v510 = vsub.s32 %v507, %v509
        %v511 = vrot.slane %v504, %v510
        %v512 = vcombine.low %v482, %v498
        %v514 = vunpack.c.l.s4 1983009808
        %v515 = vunpack.c.0.s8 %v514
        %v516 = vlaneseq
        %v517 = vshrl.u32 %v516, 7
        %v518 = vsub.s32 %v515, %v517
        %v519 = vrot.slane %v512, %v518
        %v520 = vcombine.low %v511, %v519
        %v522 = vunpack.c.l.s4 1934713408
        %v523 = vunpack.c.0.s8 %v522
        %v524 = vlaneseq
        %v525 = vshrl.u32 %v524, 7
        %v526 = vsub.s32 %v523, %v525
        %v527 = vrot.slane %v520, %v526
        %v528 = vcombine.high %v527, 0
        %v529 = vcombine.low %v478, %v494
        %v531 = vunpack.c.l.s4 1983009808
        %v532 = vunpack.c.0.s8 %v531
        %v533 = vlaneseq
        %v534 = vshrl.u32 %v533, 7
        %v535 = vsub.s32 %v532, %v534
        %v536 = vrot.slane %v529, %v535
        %v537 = vcombine.low %v486, %v502
        %v539 = vunpack.c.l.s4 1983009808
        %v540 = vunpack.c.0.s8 %v539
        %v541 = vlaneseq
        %v542 = vshrl.u32 %v541, 7
        %v543 = vsub.s32 %v540, %v542
        %v544 = vrot.slane %v537, %v543
        %v545 = vcombine.low %v536, %v544
        %v547 = vunpack.c.l.s4 1934713408
        %v548 = vunpack.c.0.s8 %v547
        %v549 = vlaneseq
        %v550 = vshrl.u32 %v549, 7
        %v551 = vsub.s32 %v548, %v550
        %v552 = vrot.slane %v545, %v551
        %v553 = vcombine.high %v552, 0
        %v556 = vpack.i.b16 %v552, %v527
        %v558 = vshrl.u32 %v527, 16
        %v559 = vshrl.u32 %v552, 16
        %v560 = vpack.i.b16 %v559, %v558
        %v564 = vpack.i.b16 %v553, %v528
        %v566 = vshrl.u32 %v528, 16
        %v567 = vshrl.u32 %v553, 16
        %v568 = vpack.i.b16 %v567, %v566
        %vm570 = vcmask 257024
        %571 = vst.msk [vmem:[%s253] sm:$0xf] %vm570, %v556
        %572 = vst.msk [vmem:[%s253 + $0x4] sm:$0xf] %vm570, %v560
        %573 = vst.msk [vmem:[%s253 + $0x8] sm:$0xf] %vm570, %v564
        %574 = vst.msk [vmem:[%s253 + $0xc] sm:$0xf] %vm570, %v568
        %576 = vrot.lane.b32.xlu0 %v396, 96
        %v577 = vpop.permute.xlu0 %576
        %578 = vrot.lane.b32.xlu0 %v396, 64
        %v579 = vpop.permute.xlu0 %578
        %580 = vrot.lane.b32.xlu0 %v396, 32
        %v581 = vpop.permute.xlu0 %580
        %v583 = vunpack.c.l.s4 1983009808
        %v584 = vunpack.c.0.s8 %v583
        %v585 = vlaneseq
        %v586 = vshrl.u32 %v585, 7
        %v587 = vsub.s32 %v584, %v586
        %v588 = vrot.slane %v396, %v587
        %v591 = vunpack.c.l.s4 1983009808
        %v592 = vunpack.c.0.s8 %v591
        %v593 = vlaneseq
        %v594 = vshrl.u32 %v593, 7
        %v595 = vsub.s32 %v592, %v594
        %v596 = vrot.slane %v579, %v595
        %v597 = vcombine.low %v588, %v596
        %v598 = vcombine.high %v588, %v596
        %v600 = vunpack.c.l.s4 1934713408
        %v601 = vunpack.c.0.s8 %v600
        %v602 = vlaneseq
        %v603 = vshrl.u32 %v602, 7
        %v604 = vsub.s32 %v601, %v603
        %v605 = vrot.slane %v597, %v604
        %v607 = vunpack.c.l.s4 1934713408
        %v608 = vunpack.c.0.s8 %v607
        %v609 = vlaneseq
        %v610 = vshrl.u32 %v609, 7
        %v611 = vsub.s32 %v608, %v610
        %v612 = vrot.slane %v598, %v611
        %v613 = vcombine.high %v605, 0
        %v614 = vcombine.high %v612, 0
        %v617 = vunpack.c.l.s4 1983009808
        %v618 = vunpack.c.0.s8 %v617
        %v619 = vlaneseq
        %v620 = vshrl.u32 %v619, 7
        %v621 = vsub.s32 %v618, %v620
        %v622 = vrot.slane %v577, %v621
        %v625 = vunpack.c.l.s4 1983009808
        %v626 = vunpack.c.0.s8 %v625
        %v627 = vlaneseq
        %v628 = vshrl.u32 %v627, 7
        %v629 = vsub.s32 %v626, %v628
        %v630 = vrot.slane %v581, %v629
        %v631 = vcombine.low %v622, %v630
        %v632 = vcombine.high %v622, %v630
        %v634 = vunpack.c.l.s4 1934713408
        %v635 = vunpack.c.0.s8 %v634
        %v636 = vlaneseq
        %v637 = vshrl.u32 %v636, 7
        %v638 = vsub.s32 %v635, %v637
        %v639 = vrot.slane %v631, %v638
        %v641 = vunpack.c.l.s4 1934713408
        %v642 = vunpack.c.0.s8 %v641
        %v643 = vlaneseq
        %v644 = vshrl.u32 %v643, 7
        %v645 = vsub.s32 %v642, %v644
        %v646 = vrot.slane %v632, %v645
        %v647 = vcombine.high %v639, 0
        %v648 = vcombine.high %v646, 0
        %v651 = vpack.i.b16 %v639, %v605
        %v653 = vshrl.u32 %v605, 16
        %v654 = vshrl.u32 %v639, 16
        %v655 = vpack.i.b16 %v654, %v653
        %v659 = vpack.i.b16 %v647, %v613
        %v661 = vshrl.u32 %v613, 16
        %v662 = vshrl.u32 %v647, 16
        %v663 = vpack.i.b16 %v662, %v661
        %v667 = vpack.i.b16 %v646, %v612
        %v669 = vshrl.u32 %v612, 16
        %v670 = vshrl.u32 %v646, 16
        %v671 = vpack.i.b16 %v670, %v669
        %v675 = vpack.i.b16 %v648, %v614
        %v677 = vshrl.u32 %v614, 16
        %v678 = vshrl.u32 %v648, 16
        %v679 = vpack.i.b16 %v678, %v677
        %v681 = vcombine.low %v651, %v667
        %v683 = vunpack.c.l.s4 1983009808
        %v684 = vunpack.c.0.s8 %v683
        %v685 = vlaneseq
        %v686 = vshrl.u32 %v685, 7
        %v687 = vsub.s32 %v684, %v686
        %v688 = vrot.slane %v681, %v687
        %v689 = vcombine.low %v659, %v675
        %v691 = vunpack.c.l.s4 1983009808
        %v692 = vunpack.c.0.s8 %v691
        %v693 = vlaneseq
        %v694 = vshrl.u32 %v693, 7
        %v695 = vsub.s32 %v692, %v694
        %v696 = vrot.slane %v689, %v695
        %v697 = vcombine.low %v688, %v696
        %v699 = vunpack.c.l.s4 1934713408
        %v700 = vunpack.c.0.s8 %v699
        %v701 = vlaneseq
        %v702 = vshrl.u32 %v701, 7
        %v703 = vsub.s32 %v700, %v702
        %v704 = vrot.slane %v697, %v703
        %v705 = vcombine.high %v704, 0
        %v706 = vcombine.low %v655, %v671
        %v708 = vunpack.c.l.s4 1983009808
        %v709 = vunpack.c.0.s8 %v708
        %v710 = vlaneseq
        %v711 = vshrl.u32 %v710, 7
        %v712 = vsub.s32 %v709, %v711
        %v713 = vrot.slane %v706, %v712
        %v714 = vcombine.low %v663, %v679
        %v716 = vunpack.c.l.s4 1983009808
        %v717 = vunpack.c.0.s8 %v716
        %v718 = vlaneseq
        %v719 = vshrl.u32 %v718, 7
        %v720 = vsub.s32 %v717, %v719
        %v721 = vrot.slane %v714, %v720
        %v722 = vcombine.low %v713, %v721
        %v724 = vunpack.c.l.s4 1934713408
        %v725 = vunpack.c.0.s8 %v724
        %v726 = vlaneseq
        %v727 = vshrl.u32 %v726, 7
        %v728 = vsub.s32 %v725, %v727
        %v729 = vrot.slane %v722, %v728
        %v730 = vcombine.high %v729, 0
        %v733 = vpack.i.b16 %v729, %v704
        %v735 = vshrl.u32 %v704, 16
        %v736 = vshrl.u32 %v729, 16
        %v737 = vpack.i.b16 %v736, %v735
        %v741 = vpack.i.b16 %v730, %v705
        %v743 = vshrl.u32 %v705, 16
        %v744 = vshrl.u32 %v730, 16
        %v745 = vpack.i.b16 %v744, %v743
        %747 = vst.msk [vmem:[%s260] sm:$0xf] %vm570, %v733
        %748 = vst.msk [vmem:[%s260 + $0x4] sm:$0xf] %vm570, %v737
        %749 = vst.msk [vmem:[%s260 + $0x8] sm:$0xf] %vm570, %v741
        %750 = vst.msk [vmem:[%s260 + $0xc] sm:$0xf] %vm570, %v745
        %752 = vrot.lane.b32.xlu0 %v397, 96
        %v753 = vpop.permute.xlu0 %752
        %754 = vrot.lane.b32.xlu0 %v397, 64
        %v755 = vpop.permute.xlu0 %754
        %756 = vrot.lane.b32.xlu0 %v397, 32
        %v757 = vpop.permute.xlu0 %756
        %v759 = vunpack.c.l.s4 1983009808
        %v760 = vunpack.c.0.s8 %v759
        %v761 = vlaneseq
        %v762 = vshrl.u32 %v761, 7
        %v763 = vsub.s32 %v760, %v762
        %v764 = vrot.slane %v397, %v763
        %v767 = vunpack.c.l.s4 1983009808
        %v768 = vunpack.c.0.s8 %v767
        %v769 = vlaneseq
        %v770 = vshrl.u32 %v769, 7
        %v771 = vsub.s32 %v768, %v770
        %v772 = vrot.slane %v755, %v771
        %v773 = vcombine.low %v764, %v772
        %v774 = vcombine.high %v764, %v772
        %v776 = vunpack.c.l.s4 1934713408
        %v777 = vunpack.c.0.s8 %v776
        %v778 = vlaneseq
        %v779 = vshrl.u32 %v778, 7
        %v780 = vsub.s32 %v777, %v779
        %v781 = vrot.slane %v773, %v780
        %v783 = vunpack.c.l.s4 1934713408
        %v784 = vunpack.c.0.s8 %v783
        %v785 = vlaneseq
        %v786 = vshrl.u32 %v785, 7
        %v787 = vsub.s32 %v784, %v786
        %v788 = vrot.slane %v774, %v787
        %v789 = vcombine.high %v781, 0
        %v790 = vcombine.high %v788, 0
        %v793 = vunpack.c.l.s4 1983009808
        %v794 = vunpack.c.0.s8 %v793
        %v795 = vlaneseq
        %v796 = vshrl.u32 %v795, 7
        %v797 = vsub.s32 %v794, %v796
        %v798 = vrot.slane %v753, %v797
        %v801 = vunpack.c.l.s4 1983009808
        %v802 = vunpack.c.0.s8 %v801
        %v803 = vlaneseq
        %v804 = vshrl.u32 %v803, 7
        %v805 = vsub.s32 %v802, %v804
        %v806 = vrot.slane %v757, %v805
        %v807 = vcombine.low %v798, %v806
        %v808 = vcombine.high %v798, %v806
        %v810 = vunpack.c.l.s4 1934713408
        %v811 = vunpack.c.0.s8 %v810
        %v812 = vlaneseq
        %v813 = vshrl.u32 %v812, 7
        %v814 = vsub.s32 %v811, %v813
        %v815 = vrot.slane %v807, %v814
        %v817 = vunpack.c.l.s4 1934713408
        %v818 = vunpack.c.0.s8 %v817
        %v819 = vlaneseq
        %v820 = vshrl.u32 %v819, 7
        %v821 = vsub.s32 %v818, %v820
        %v822 = vrot.slane %v808, %v821
        %v823 = vcombine.high %v815, 0
        %v824 = vcombine.high %v822, 0
        %v827 = vpack.i.b16 %v815, %v781
        %v829 = vshrl.u32 %v781, 16
        %v830 = vshrl.u32 %v815, 16
        %v831 = vpack.i.b16 %v830, %v829
        %v835 = vpack.i.b16 %v823, %v789
        %v837 = vshrl.u32 %v789, 16
        %v838 = vshrl.u32 %v823, 16
        %v839 = vpack.i.b16 %v838, %v837
        %v843 = vpack.i.b16 %v822, %v788
        %v845 = vshrl.u32 %v788, 16
        %v846 = vshrl.u32 %v822, 16
        %v847 = vpack.i.b16 %v846, %v845
        %v851 = vpack.i.b16 %v824, %v790
        %v853 = vshrl.u32 %v790, 16
        %v854 = vshrl.u32 %v824, 16
        %v855 = vpack.i.b16 %v854, %v853
        %v857 = vcombine.low %v827, %v843
        %v859 = vunpack.c.l.s4 1983009808
        %v860 = vunpack.c.0.s8 %v859
        %v861 = vlaneseq
        %v862 = vshrl.u32 %v861, 7
        %v863 = vsub.s32 %v860, %v862
        %v864 = vrot.slane %v857, %v863
        %v865 = vcombine.low %v835, %v851
        %v867 = vunpack.c.l.s4 1983009808
        %v868 = vunpack.c.0.s8 %v867
        %v869 = vlaneseq
        %v870 = vshrl.u32 %v869, 7
        %v871 = vsub.s32 %v868, %v870
        %v872 = vrot.slane %v865, %v871
        %v873 = vcombine.low %v864, %v872
        %v875 = vunpack.c.l.s4 1934713408
        %v876 = vunpack.c.0.s8 %v875
        %v877 = vlaneseq
        %v878 = vshrl.u32 %v877, 7
        %v879 = vsub.s32 %v876, %v878
        %v880 = vrot.slane %v873, %v879
        %v881 = vcombine.high %v880, 0
        %v882 = vcombine.low %v831, %v847
        %v884 = vunpack.c.l.s4 1983009808
        %v885 = vunpack.c.0.s8 %v884
        %v886 = vlaneseq
        %v887 = vshrl.u32 %v886, 7
        %v888 = vsub.s32 %v885, %v887
        %v889 = vrot.slane %v882, %v888
        %v890 = vcombine.low %v839, %v855
        %v892 = vunpack.c.l.s4 1983009808
        %v893 = vunpack.c.0.s8 %v892
        %v894 = vlaneseq
        %v895 = vshrl.u32 %v894, 7
        %v896 = vsub.s32 %v893, %v895
        %v897 = vrot.slane %v890, %v896
        %v898 = vcombine.low %v889, %v897
        %v900 = vunpack.c.l.s4 1934713408
        %v901 = vunpack.c.0.s8 %v900
        %v902 = vlaneseq
        %v903 = vshrl.u32 %v902, 7
        %v904 = vsub.s32 %v901, %v903
        %v905 = vrot.slane %v898, %v904
        %v906 = vcombine.high %v905, 0
        %v909 = vpack.i.b16 %v905, %v880
        %v911 = vshrl.u32 %v880, 16
        %v912 = vshrl.u32 %v905, 16
        %v913 = vpack.i.b16 %v912, %v911
        %v917 = vpack.i.b16 %v906, %v881
        %v919 = vshrl.u32 %v881, 16
        %v920 = vshrl.u32 %v906, 16
        %v921 = vpack.i.b16 %v920, %v919
        %923 = vst.msk [vmem:[%s267] sm:$0xf] %vm570, %v909
        %924 = vst.msk [vmem:[%s267 + $0x4] sm:$0xf] %vm570, %v913
        %925 = vst.msk [vmem:[%s267 + $0x8] sm:$0xf] %vm570, %v917
        %926 = vst.msk [vmem:[%s267 + $0xc] sm:$0xf] %vm570, %v921
        %s927 = sand.u32 %s97, 1
        %s928 = scalar_lea.sflag [#allocation4], %s927
        %s929 = sand.u32 %s97, 1
        %s930 = smul.addr %s929, 16
        %s931 = scalar_lea.vmem [#allocation7], %s930
        %s932 = sand.u32 %s26, 1
        %s933 = scalar_lea.sflag [#allocation9], %s932
        %s934 = sand.u32 %s125, 1
        %s935 = smul.addr %s934, 16
        %s936 = scalar_lea.vmem [#allocation8], %s935
        %s937 = sand.u32 %s26, 1
        %s938 = scalar_lea.sflag [#allocation9], %s937
        %s939 = sand.u32 %s153, 1
        %s940 = smul.addr %s939, 16
        %s941 = scalar_lea.vmem [#allocation10], %s940
        // Predicated region
        $region37: #{tpu_custom_call.1} parent=27 // pred_check
          %p942 = pneg %p107
        $region38: #{tpu_custom_call.1} parent=27 // pred_check_branch
          %944 = sbr.rel (%p942) target = $region40
        $region39: #{tpu_custom_call.1} parent=27 // pred_region
          %s946 = ssub.s32 256, 256
          %947 = vsyncadd %s928, %s946
          %s948 = smul.addr %s30, 8
          %s949 = sadd.s32 %s31, %s948
          %s950 = smul.addr %s949, 64
          %s951 = scalar_lea.hbm %s2, %s950
          %s952 = sshll.u32 %s931, 4
          %s953 = int_to_ptr.vmem [resolvable:$true] %s952
          %958 = dma.vmem_to_hbm [thread:$0]  %s953, 256, %s951, %s928, 64, 128, 4
        $region40: #{tpu_custom_call.1} parent=27 // pred_fallthru
          _
        // Predicated region
        $region41: #{tpu_custom_call.1} parent=27 // pred_check
          %p959 = pneg %p135
        $region42: #{tpu_custom_call.1} parent=27 // pred_check_branch
          %961 = sbr.rel (%p959) target = $region44
        $region43: #{tpu_custom_call.1} parent=27 // pred_region
          %s963 = ssub.s32 256, 256
          %964 = vsyncadd %s933, %s963
          %s965 = smul.addr %s30, 8
          %s966 = sadd.s32 %s31, %s965
          %s967 = smul.addr %s966, 64
          %s968 = scalar_lea.hbm %s3, %s967
          %s969 = sshll.u32 %s936, 4
          %s970 = int_to_ptr.vmem [resolvable:$true] %s969
          %975 = dma.vmem_to_hbm [thread:$0]  %s970, 256, %s968, %s933, 64, 128, 4
        $region44: #{tpu_custom_call.1} parent=27 // pred_fallthru
          _
        // Predicated region
        $region45: #{tpu_custom_call.1} parent=27 // pred_check
          %p976 = pneg %p163
        $region46: #{tpu_custom_call.1} parent=27 // pred_check_branch
          %978 = sbr.rel (%p976) target = $region48
        $region47: #{tpu_custom_call.1} parent=27 // pred_region
          %s980 = ssub.s32 256, 256
          %981 = vsyncadd %s938, %s980
          %s982 = smul.addr %s30, 8
          %s983 = sadd.s32 %s31, %s982
          %s984 = smul.addr %s983, 64
          %s985 = scalar_lea.hbm %s4, %s984
          %s986 = sshll.u32 %s941, 4
          %s987 = int_to_ptr.vmem [resolvable:$true] %s986
          %992 = dma.vmem_to_hbm [thread:$0]  %s987, 256, %s985, %s938, 64, 128, 4
        $region48: #{tpu_custom_call.1} parent=27 // pred_fallthru
          _
      $region28: #{tpu_custom_call.1} parent=5 // pred_fallthru
        _
      %p993 = scmp.le.s32.totalorder 2, %s21
      // Predicated region
      $region49: #{tpu_custom_call.1} parent=5 // pred_check
        %p994 = pneg %p993
      $region50: #{tpu_custom_call.1} parent=5 // pred_check_branch
        %996 = sbr.rel (%p994) target = $region52
      $region51: #{tpu_custom_call.1} parent=5 // pred_region
        %s997 = ssub.s32 %s21, 2
        // Predicated region
        $region53: #{tpu_custom_call.1} parent=51 // pred_check
          %p998 = pneg %p113
        $region54: #{tpu_custom_call.1} parent=51 // pred_check_branch
          %1000 = sbr.rel (%p998) target = $region56
        $region55: #{tpu_custom_call.1} parent=51 // pred_region
          %s1001 = sand.u32 %s98, 1
          %s1002 = scalar_lea.sflag [#allocation4], %s1001
          %s1003 = sand.u32 %s98, 1
          %s1004 = smul.addr %s1003, 16
          %s1005 = scalar_lea.vmem [#allocation7], %s1004
          %1006 = dma.done %s1002, 256
        $region56: #{tpu_custom_call.1} parent=51 // pred_fallthru
          _
        // Predicated region
        $region57: #{tpu_custom_call.1} parent=51 // pred_check
          %p1007 = pneg %p141
        $region58: #{tpu_custom_call.1} parent=51 // pred_check_branch
          %1009 = sbr.rel (%p1007) target = $region60
        $region59: #{tpu_custom_call.1} parent=51 // pred_region
          %s1010 = sand.u32 %s27, 1
          %s1011 = scalar_lea.sflag [#allocation9], %s1010
          %s1012 = sand.u32 %s126, 1
          %s1013 = smul.addr %s1012, 16
          %s1014 = scalar_lea.vmem [#allocation8], %s1013
          %1015 = dma.done %s1011, 256
        $region60: #{tpu_custom_call.1} parent=51 // pred_fallthru
          _
        // Predicated region
        $region61: #{tpu_custom_call.1} parent=51 // pred_check
          %p1016 = pneg %p169
        $region62: #{tpu_custom_call.1} parent=51 // pred_check_branch
          %1018 = sbr.rel (%p1016) target = $region64
        $region63: #{tpu_custom_call.1} parent=51 // pred_region
          %s1019 = sand.u32 %s27, 1
          %s1020 = scalar_lea.sflag [#allocation9], %s1019
          %s1021 = sand.u32 %s154, 1
          %s1022 = smul.addr %s1021, 16
          %s1023 = scalar_lea.vmem [#allocation10], %s1022
          %1024 = dma.done %s1020, 256
        $region64: #{tpu_custom_call.1} parent=51 // pred_fallthru
          _
      $region52: #{tpu_custom_call.1} parent=5 // pred_fallthru
        _
    $region6: #{tpu_custom_call.1} parent=1 // loop_footer
      %s25 = sadd.s32 1, %s21
    $region7: #{tpu_custom_call.1} parent=1 // loop_footer_branch
      %20 = sbr.rel target = $region3
    $region8: #{tpu_custom_call.1} parent=1 // loop_exit
      _
    %1025 = vsyncpa [#allocation3], 1
    %s1026 = scalar_lea.sflag [#allocation3], 1
    %1027 = vsyncpa %s1026, 1
    %1028 = vsyncpa [#allocation6], 1
    %1029 = vsyncpa [#allocation4], 1
    %s1030 = scalar_lea.sflag [#allocation4], 1
    %1031 = vsyncpa %s1030, 1
    %1032 = vsyncpa [#allocation9], 1
    %s1033 = scalar_lea.sflag [#allocation9], 1
    %1034 = vsyncpa %s1033, 1

</llo_original>
